<compile_context>
chip_gen: v5e
topology: v5e:2x2
jax: 0.10.0
libtpu: 0.0.40
codegen_flags: <defaults>
</compile_context>

<pallas_src>
import jax
import jax.numpy as jnp
from jax.experimental import pallas as pl
from jax.experimental.pallas import tpu as pltpu

EMBED_DIM = 64
CLASSES = 6
H1_DIM = 128          # per-block output width of mlp1 (Linear(256, 128))
H1_WIDTH = 256        # mlp1 hidden width


# --------------------------------------------------------------------------------------
# Kernels
# --------------------------------------------------------------------------------------
def _mlp1_kernel(agg_ref, w1a_ref, b1a_ref, s1_ref, t1_ref, w1b_ref, b1b_ref, h_ref):
    """mlp1 (Linear(1,256)->BN->ReLU->Linear(256,128)) for both blocks on hop-1 aggregates."""
    agg = agg_ref[...]                                   # (TM, 2) f32; col0 = block-1, col1 = block-2

    def pre(col):                                        # Linear(1,256) via broadcast + BN(eval) + ReLU
        h = col * w1a_ref[...] + b1a_ref[...]
        return jnp.maximum(h * s1_ref[...] + t1_ref[...], 0.0).astype(jnp.bfloat16)

    w1b = w1b_ref[...]
    h1 = jnp.dot(pre(agg[:, 0:1]), w1b, preferred_element_type=jnp.float32) + b1b_ref[...]
    h2 = jnp.dot(pre(agg[:, 1:2]), w1b, preferred_element_type=jnp.float32) + b1b_ref[...]
    # dropout: identity (eval).  Direct 128-lane-aligned half-width stores (no concat relayout).
    h_ref[:, :H1_DIM] = h1.astype(jnp.bfloat16)
    h_ref[:, H1_DIM:] = h2.astype(jnp.bfloat16)


def _hop2_head_kernel(a_ref, h_ref, w2a_ref, b2a_ref, s2_ref, t2_ref, w2b_ref, b2b_ref,
                      lw1_ref, lb1_ref, lw2_ref, lb2_ref, out_ref, acc_ref):
    """K-tiled hop-2 GIN aggregation + block-diag mlp2 + SimpleConcat head + log_softmax."""
    k = pl.program_id(1)

    @pl.when(k == 0)
    def _():
        acc_ref[...] = jnp.zeros_like(acc_ref)

    # hop-2 aggregation for BOTH blocks at once: (TM, TK) @ (TK, 256) bf16 MXU, f32 accumulate.
    acc_ref[...] += jnp.dot(a_ref[...], h_ref[...], preferred_element_type=jnp.float32)

    @pl.when(k == pl.num_programs(1) - 1)
    def _():
        agg = acc_ref[...]                                                     # (TM, 256) f32
        # mlp2 with block-diagonal packed weights: one pass serves both blocks.
        g = jnp.dot(agg.astype(jnp.bfloat16), w2a_ref[...],
                    preferred_element_type=jnp.float32) + b2a_ref[...]         # Linear(128,64) x2 -> (TM,128)
        g = jnp.maximum(g * s2_ref[...] + t2_ref[...], 0.0)                    # BN(64) x2 (eval) + ReLU
        g = jnp.dot(g.astype(jnp.bfloat16), w2b_ref[...],
                    preferred_element_type=jnp.float32) + b2b_ref[...]         # Linear(64,64) x2 -> (TM,128)
        # SimpleConcat head: cat([h1, h2], dim=1) @ lw1 is exactly g @ lw1 (128 -> 6).
        z = jnp.maximum(jnp.dot(g, lw1_ref[...], preferred_element_type=jnp.float32)
                        + lb1_ref[...], 0.0)                                   # relu(linear1)
        z = jnp.dot(z, lw2_ref[...], preferred_element_type=jnp.float32) + lb2_ref[...]   # linear2
        # log_softmax(dim=1), max-stabilized.
        m = jnp.max(z, axis=-1, keepdims=True)
        out_ref[...] = z - (jnp.log(jnp.sum(jnp.exp(z - m), axis=-1, keepdims=True)) + m)


# --------------------------------------------------------------------------------------
# Wrapper
# --------------------------------------------------------------------------------------
def _full_spec(arr):
    # Small operand, fully resident in VMEM; same block at every grid step.
    return pl.BlockSpec(arr.shape, lambda *_: (0,) * arr.ndim)


def _vmem_limit_bytes():
    # Per-generation VMEM budget: ~80% of physical (~102 MiB on v5e/v6e, ~51 MiB on v7x).
    try:
        cap = int(pltpu.get_tpu_info().vmem_capacity_bytes)
    except Exception:
        cap = 64 * 1024 * 1024
    return min(int(cap * 0.8), 112 * 1024 * 1024)


def _block_diag2(w):
    """[[w, 0], [0, w]] -- lets one matmul apply the same dense layer to two stacked blocks."""
    z = jnp.zeros_like(w)
    return jnp.concatenate([jnp.concatenate([w, z], axis=1),
                            jnp.concatenate([z, w], axis=1)], axis=0)


def aug_gnn_forward(x, edge_index, params):
    """x: (N, 2) float node features; edge_index: (2, E) int32 [src; dst] (messages src->dst)."""
    (w1a, b1a, s1, t1, w1b, b1b,
     w2a, b2a, s2, t2, w2b, b2b,
     lw1, lb1, lw2, lb2) = params
    n = x.shape[0]

    # ----- padding / tile sizes (row tiles >= 128, K tile lane-aligned) -----
    if n <= 4096:
        n_pad = max(256, pl.cdiv(n, 256) * 256)
        tk = n_pad
        tm = 128 if n_pad == 256 else 256          # >= 2 row tiles even at small N (megacore)
    else:
        n_pad = pl.cdiv(n, 4096) * 4096
        tk = 4096
        tm = 512

    # ----- hop-1 GIN aggregation as an O(E) scatter-add (no dense A_hat read) -----
    # Block-1 consumes x[:, 1], block-2 consumes x[:, 0] (SimpleConcat ordering).
    feat = x.astype(jnp.float32)[:, ::-1]                                      # (N, 2)
    src, dst = edge_index[0], edge_index[1]
    agg1 = feat + jnp.zeros_like(feat).at[dst].add(feat[src])                  # (1+eps)*x + sum_nbr, eps=0
    agg1 = jnp.zeros((n_pad, 2), jnp.float32).at[:n].set(agg1)

    # ----- dense GIN propagation matrix for hop-2, built directly in bf16 -----
    # A_hat[dst, src] += 1 per edge plus self-loops; small integer counts are exact in bf16
    # (valid while multi-edge multiplicity + 1 stays <= 256).  Padded rows/cols stay zero.
    idx = jnp.arange(n, dtype=edge_index.dtype)
    rows = jnp.concatenate([dst, idx])
    cols = jnp.concatenate([src, idx])
    a_hat = jnp.zeros((n_pad, n_pad), jnp.bfloat16).at[rows, cols].add(1.0)

    # ----- block-diagonal packing for mlp2 / head, bf16 master copies for MXU operands -----
    w1b_bf = w1b.astype(jnp.bfloat16)
    w2a_bd = _block_diag2(w2a).astype(jnp.bfloat16)        # (256, 128)
    w2b_bd = _block_diag2(w2b).astype(jnp.bfloat16)        # (128, 128)
    b2a_2, b2b_2 = jnp.tile(b2a, (1, 2)), jnp.tile(b2b, (1, 2))
    s2_2, t2_2 = jnp.tile(s2, (1, 2)), jnp.tile(t2, (1, 2))

    vmem = _vmem_limit_bytes()
    cparams1 = pltpu.CompilerParams(dimension_semantics=("parallel",),
                                    vmem_limit_bytes=vmem)
    cparams2 = pltpu.CompilerParams(dimension_semantics=("parallel", "arbitrary"),
                                    vmem_limit_bytes=vmem)

    # ---- pass 1 (cheap): mlp1 for both blocks -> h_cat (n_pad, 256) bf16 ----
    mlp1_args = (agg1, w1a, b1a, s1, t1, w1b_bf, b1b)
    h_cat = pl.pallas_call(
        _mlp1_kernel,
        out_shape=jax.ShapeDtypeStruct((n_pad, 2 * H1_DIM), jnp.bfloat16),
        grid=(n_pad // tm,),
        in_specs=[pl.BlockSpec((tm, 2), lambda i: (i, 0))]
                 + [_full_spec(a) for a in mlp1_args[1:]],
        out_specs=pl.BlockSpec((tm, 2 * H1_DIM), lambda i: (i, 0)),
        compiler_params=cparams1,
    )(*mlp1_args)

    # ---- pass 2 (dominant): K-tiled hop-2 aggregation + mlp2 + head + log_softmax ----
    hop2_args = (a_hat, h_cat, w2a_bd, b2a_2, s2_2, t2_2, w2b_bd, b2b_2, lw1, lb1, lw2, lb2)
    out = pl.pallas_call(
        _hop2_head_kernel,
        out_shape=jax.ShapeDtypeStruct((n_pad, CLASSES), jnp.float32),
        grid=(n_pad // tm, n_pad // tk),                       # reduction axis last
        in_specs=[pl.BlockSpec((tm, tk), lambda i, k: (i, k)),
                  pl.BlockSpec((tk, 2 * H1_DIM), lambda i, k: (k, 0))]
                 + [_full_spec(a) for a in hop2_args[2:]],
        out_specs=pl.BlockSpec((tm, CLASSES), lambda i, k: (i, 0)),
        scratch_shapes=[pltpu.VMEM((tm, 2 * H1_DIM), jnp.float32)],
        compiler_params=cparams2,
    )(*hop2_args)

    return out[:n, :]


# --------------------------------------------------------------------------------------
# Synthetic parameters + pure-JAX reference
# --------------------------------------------------------------------------------------
def _bn_fold(gamma, beta, mean, var, eps=1e-5):
    scale = gamma / jnp.sqrt(var + eps)
    shift = beta - mean * scale
    return scale[None, :], shift[None, :]


def init_params(key):
    """Deterministic synthetic parameters matching the module's shapes (f32 master copies)."""
    ks = jax.random.split(key, 8)

    def lin(k, fan_in, fan_out):
        w = jax.random.normal(k, (fan_in, fan_out), jnp.float32) / jnp.sqrt(float(fan_in))
        b = jnp.zeros((1, fan_out), jnp.float32)
        return w, b

    # GINConv mlp1: Linear(1,256) -> BN(256) -> ReLU -> Linear(256,128)
    w1a, b1a = lin(ks[0], 1, 256)
    s1, t1 = _bn_fold(jnp.ones(256), jnp.zeros(256), jnp.zeros(256), jnp.ones(256))
    w1b, b1b = lin(ks[1], 256, 128)
    # GINConv mlp2: Linear(128,64) -> BN(64) -> ReLU -> Linear(64,64)
    w2a, b2a = lin(ks[2], 128, 64)
    s2, t2 = _bn_fold(jnp.ones(64), jnp.zeros(64), jnp.zeros(64), jnp.ones(64))
    w2b, b2b = lin(ks[3], 64, 64)
    # head: linear1 (input_dim*embed_dim = 128 -> 6), linear2 (6 -> 6)
    lw1, lb1 = lin(ks[4], 2 * EMBED_DIM, CLASSES)
    lb1 = 0.01 * jax.random.normal(ks[5], (1, CLASSES), jnp.float32)
    lw2, lb2 = lin(ks[6], CLASSES, CLASSES)
    lb2 = 0.01 * jax.random.normal(ks[7], (1, CLASSES), jnp.float32)

    return (w1a, b1a, s1, t1, w1b, b1b,
            w2a, b2a, s2, t2, w2b, b2b,
            lw1, lb1, lw2, lb2)


def reference_forward(x, edge_index, params):
    """Pure-JAX f32 reference mirroring the PyTorch eval-mode forward."""
    (w1a, b1a, s1, t1, w1b, b1b,
     w2a, b2a, s2, t2, w2b, b2b,
     lw1, lb1, lw2, lb2) = params
    n = x.shape[0]
    adj = jnp.zeros((n, n), jnp.float32).at[edge_index[1], edge_index[0]].add(1.0)
    a_hat = adj + jnp.eye(n, dtype=jnp.float32)

    def block(col):
        h = a_hat @ col
        h = h * w1a + b1a
        h = jnp.maximum(h * s1 + t1, 0.0)
        h = h @ w1b + b1b
        h = a_hat @ h
        g = h @ w2a + b2a
        g = jnp.maximum(g * s2 + t2, 0.0)
        return g @ w2b + b2b

    h1 = block(x[:, 1:2])
    h2 = block(x[:, 0:1])
    z = jnp.maximum(jnp.concatenate([h1, h2], axis=1) @ lw1 + lb1, 0.0)
    z = z @ lw2 + lb2
    return jax.nn.log_softmax(z, axis=1)


# --------------------------------------------------------------------------------------
# Demo / self-test
# --------------------------------------------------------------------------------------
if __name__ == "__main__":
    key = jax.random.PRNGKey(0)
    k_x, k_p = jax.random.split(key)

    N = 16  # number of graph nodes
    x = jax.random.normal(k_x, (N, 2), jnp.float32)  # data.x: (num_nodes, input_dim=2)

    # Deterministic small graph: bidirectional ring + a few chords.
    src_ring = jnp.arange(N, dtype=jnp.int32)
    dst_ring = (src_ring + 1) % N
    extra_src = jnp.array([0, 2, 4, 6, 8, 10, 12, 14], jnp.int32)
    extra_dst = jnp.array([5, 7, 9, 11, 13, 15, 1, 3], jnp.int32)
    src = jnp.concatenate([src_ring, dst_ring, extra_src, extra_dst])
    dst = jnp.concatenate([dst_ring, src_ring, extra_dst, extra_src])
    edge_index = jnp.stack([src, dst])  # (2, E), messages flow src -> dst

    params = init_params(k_p)

    out = aug_gnn_forward(x, edge_index, params)
    out = jax.block_until_ready(out)

    ref = jax.block_until_ready(reference_forward(x, edge_index, params))
    assert out.shape == (N, CLASSES)
    # Tolerance sized for bf16 MXU operands (A_hat, h_cat, packed weights) with f32
    # accumulation vs. the pure-f32 reference — the intended precision contract.
    assert jnp.allclose(out, ref, atol=5e-2, rtol=5e-2), "kernel/reference mismatch"

    print("KERNEL_OK")
</pallas_src>

<mosaic_0001>
module attributes {stable_mosaic.version = 11 : i64} {
  func.func @_mlp1_kernel(%arg0: i32, %arg1: memref<128x2xf32, #tpu.memory_space<vmem>>, %arg2: memref<1x256xf32, #tpu.memory_space<vmem>>, %arg3: memref<1x256xf32, #tpu.memory_space<vmem>>, %arg4: memref<1x256xf32, #tpu.memory_space<vmem>>, %arg5: memref<1x256xf32, #tpu.memory_space<vmem>>, %arg6: memref<256x128xbf16, #tpu.memory_space<vmem>>, %arg7: memref<1x128xf32, #tpu.memory_space<vmem>>, %arg8: memref<128x256xbf16, #tpu.memory_space<vmem>>) attributes {dimension_semantics = [#tpu.dimension_semantics<parallel>], iteration_bounds = array<i64: 2>, scalar_prefetch = 0 : i64, scratch_operands = 0 : i64, tpu.core_type = #tpu.core_type<tc>, window_params = [{transform_indices = @transform_0, window_bounds = array<i64: 128, 2>}, {pipeline_mode = #tpu.pipeline_mode<synchronous>, transform_indices = @transform_1, window_bounds = array<i64: 1, 256>}, {pipeline_mode = #tpu.pipeline_mode<synchronous>, transform_indices = @transform_2, window_bounds = array<i64: 1, 256>}, {pipeline_mode = #tpu.pipeline_mode<synchronous>, transform_indices = @transform_3, window_bounds = array<i64: 1, 256>}, {pipeline_mode = #tpu.pipeline_mode<synchronous>, transform_indices = @transform_4, window_bounds = array<i64: 1, 256>}, {pipeline_mode = #tpu.pipeline_mode<synchronous>, transform_indices = @transform_5, window_bounds = array<i64: 256, 128>}, {pipeline_mode = #tpu.pipeline_mode<synchronous>, transform_indices = @transform_6, window_bounds = array<i64: 1, 128>}, {transform_indices = @transform_7, window_bounds = array<i64: 128, 256>}]} {
    %c0 = arith.constant 0 : index
    %c0_0 = arith.constant 0 : index
    %0 = vector.load %arg1[%c0, %c0_0] : memref<128x2xf32, #tpu.memory_space<vmem>>, vector<128x2xf32>
    %c0_1 = arith.constant 0 : index
    %c0_2 = arith.constant 0 : index
    %1 = vector.load %arg6[%c0_1, %c0_2] : memref<256x128xbf16, #tpu.memory_space<vmem>>, vector<256x128xbf16>
    %2 = vector.extract_strided_slice %0 {offsets = [0, 0], sizes = [128, 1], strides = [1, 1]} : vector<128x2xf32> to vector<128x1xf32>
    %c0_3 = arith.constant 0 : index
    %c0_4 = arith.constant 0 : index
    %3 = vector.load %arg2[%c0_3, %c0_4] : memref<1x256xf32, #tpu.memory_space<vmem>>, vector<1x256xf32>
    %4 = vector.broadcast %2 : vector<128x1xf32> to vector<128x256xf32>
    %5 = vector.broadcast %3 : vector<1x256xf32> to vector<128x256xf32>
    %6 = arith.mulf %4, %5 : vector<128x256xf32>
    %c0_5 = arith.constant 0 : index
    %c0_6 = arith.constant 0 : index
    %7 = vector.load %arg3[%c0_5, %c0_6] : memref<1x256xf32, #tpu.memory_space<vmem>>, vector<1x256xf32>
    %8 = vector.broadcast %7 : vector<1x256xf32> to vector<128x256xf32>
    %9 = arith.addf %6, %8 : vector<128x256xf32>
    %c0_7 = arith.constant 0 : index
    %c0_8 = arith.constant 0 : index
    %10 = vector.load %arg4[%c0_7, %c0_8] : memref<1x256xf32, #tpu.memory_space<vmem>>, vector<1x256xf32>
    %11 = vector.broadcast %10 : vector<1x256xf32> to vector<128x256xf32>
    %12 = arith.mulf %9, %11 : vector<128x256xf32>
    %c0_9 = arith.constant 0 : index
    %c0_10 = arith.constant 0 : index
    %13 = vector.load %arg5[%c0_9, %c0_10] : memref<1x256xf32, #tpu.memory_space<vmem>>, vector<1x256xf32>
    %14 = vector.broadcast %13 : vector<1x256xf32> to vector<128x256xf32>
    %15 = arith.addf %12, %14 : vector<128x256xf32>
    %cst = arith.constant 0.000000e+00 : f32
    %16 = vector.broadcast %cst : f32 to vector<128x256xf32>
    %17 = arith.maximumf %15, %16 : vector<128x256xf32>
    %18 = arith.truncf %17 : vector<128x256xf32> to vector<128x256xbf16>
    %cst_11 = arith.constant dense<0.000000e+00> : vector<128x128xf32>
    %19 = tpu.matmul %18, %1, %cst_11 {dimension_numbers = #tpu.dot_dimension_numbers<[1], [0], [0], [1], [0, 0, 1, 1], [], []>} : vector<128x256xbf16>, vector<256x128xbf16>, vector<128x128xf32> -> vector<128x128xf32>
    %c0_12 = arith.constant 0 : index
    %c0_13 = arith.constant 0 : index
    %20 = vector.load %arg7[%c0_12, %c0_13] : memref<1x128xf32, #tpu.memory_space<vmem>>, vector<1x128xf32>
    %21 = vector.broadcast %20 : vector<1x128xf32> to vector<128x128xf32>
    %22 = arith.addf %19, %21 : vector<128x128xf32>
    %23 = vector.extract_strided_slice %0 {offsets = [0, 1], sizes = [128, 1], strides = [1, 1]} : vector<128x2xf32> to vector<128x1xf32>
    %c0_14 = arith.constant 0 : index
    %c0_15 = arith.constant 0 : index
    %24 = vector.load %arg2[%c0_14, %c0_15] : memref<1x256xf32, #tpu.memory_space<vmem>>, vector<1x256xf32>
    %25 = vector.broadcast %23 : vector<128x1xf32> to vector<128x256xf32>
    %26 = vector.broadcast %24 : vector<1x256xf32> to vector<128x256xf32>
    %27 = arith.mulf %25, %26 : vector<128x256xf32>
    %c0_16 = arith.constant 0 : index
    %c0_17 = arith.constant 0 : index
    %28 = vector.load %arg3[%c0_16, %c0_17] : memref<1x256xf32, #tpu.memory_space<vmem>>, vector<1x256xf32>
    %29 = vector.broadcast %28 : vector<1x256xf32> to vector<128x256xf32>
    %30 = arith.addf %27, %29 : vector<128x256xf32>
    %c0_18 = arith.constant 0 : index
    %c0_19 = arith.constant 0 : index
    %31 = vector.load %arg4[%c0_18, %c0_19] : memref<1x256xf32, #tpu.memory_space<vmem>>, vector<1x256xf32>
    %32 = vector.broadcast %31 : vector<1x256xf32> to vector<128x256xf32>
    %33 = arith.mulf %30, %32 : vector<128x256xf32>
    %c0_20 = arith.constant 0 : index
    %c0_21 = arith.constant 0 : index
    %34 = vector.load %arg5[%c0_20, %c0_21] : memref<1x256xf32, #tpu.memory_space<vmem>>, vector<1x256xf32>
    %35 = vector.broadcast %34 : vector<1x256xf32> to vector<128x256xf32>
    %36 = arith.addf %33, %35 : vector<128x256xf32>
    %cst_22 = arith.constant 0.000000e+00 : f32
    %37 = vector.broadcast %cst_22 : f32 to vector<128x256xf32>
    %38 = arith.maximumf %36, %37 : vector<128x256xf32>
    %39 = arith.truncf %38 : vector<128x256xf32> to vector<128x256xbf16>
    %cst_23 = arith.constant dense<0.000000e+00> : vector<128x128xf32>
    %40 = tpu.matmul %39, %1, %cst_23 {dimension_numbers = #tpu.dot_dimension_numbers<[1], [0], [0], [1], [0, 0, 1, 1], [], []>} : vector<128x256xbf16>, vector<256x128xbf16>, vector<128x128xf32> -> vector<128x128xf32>
    %c0_24 = arith.constant 0 : index
    %c0_25 = arith.constant 0 : index
    %41 = vector.load %arg7[%c0_24, %c0_25] : memref<1x128xf32, #tpu.memory_space<vmem>>, vector<1x128xf32>
    %42 = vector.broadcast %41 : vector<1x128xf32> to vector<128x128xf32>
    %43 = arith.addf %40, %42 : vector<128x128xf32>
    %44 = arith.truncf %22 : vector<128x128xf32> to vector<128x128xbf16>
    %c0_26 = arith.constant 0 : index
    %c0_27 = arith.constant 0 : index
    %45 = vector.load %arg8[%c0_26, %c0_27] : memref<128x256xbf16, #tpu.memory_space<vmem>>, vector<128x128xbf16>
    tpu.vector_store %arg8[%c0_26, %c0_27], %44 {strides = array<i32>} : memref<128x256xbf16, #tpu.memory_space<vmem>>, vector<128x128xbf16>,
    %46 = arith.truncf %43 : vector<128x128xf32> to vector<128x128xbf16>
    %c0_28 = arith.constant 0 : index
    %c128 = arith.constant 128 : index
    %47 = vector.load %arg8[%c0_28, %c128] : memref<128x256xbf16, #tpu.memory_space<vmem>>, vector<128x128xbf16>
    tpu.vector_store %arg8[%c0_28, %c128], %46 {strides = array<i32>} : memref<128x256xbf16, #tpu.memory_space<vmem>>, vector<128x128xbf16>,
    return
  }
  func.func @transform_0(%arg0: i32) -> (i32, i32) {
    %c0_i32 = arith.constant 0 : i32
    %c0_i32_0 = arith.constant 0 : i32
    return %arg0, %c0_i32 : i32, i32
  }
  func.func @transform_1(%arg0: i32) -> (i32, i32) {
    %c0_i32 = arith.constant 0 : i32
    %c0_i32_0 = arith.constant 0 : i32
    %c0_i32_1 = arith.constant 0 : i32
    return %c0_i32, %c0_i32_0 : i32, i32
  }
  func.func @transform_2(%arg0: i32) -> (i32, i32) {
    %c0_i32 = arith.constant 0 : i32
    %c0_i32_0 = arith.constant 0 : i32
    %c0_i32_1 = arith.constant 0 : i32
    return %c0_i32, %c0_i32_0 : i32, i32
  }
  func.func @transform_3(%arg0: i32) -> (i32, i32) {
    %c0_i32 = arith.constant 0 : i32
    %c0_i32_0 = arith.constant 0 : i32
    %c0_i32_1 = arith.constant 0 : i32
    return %c0_i32, %c0_i32_0 : i32, i32
  }
  func.func @transform_4(%arg0: i32) -> (i32, i32) {
    %c0_i32 = arith.constant 0 : i32
    %c0_i32_0 = arith.constant 0 : i32
    %c0_i32_1 = arith.constant 0 : i32
    return %c0_i32, %c0_i32_0 : i32, i32
  }
  func.func @transform_5(%arg0: i32) -> (i32, i32) {
    %c0_i32 = arith.constant 0 : i32
    %c0_i32_0 = arith.constant 0 : i32
    %c0_i32_1 = arith.constant 0 : i32
    return %c0_i32, %c0_i32_0 : i32, i32
  }
  func.func @transform_6(%arg0: i32) -> (i32, i32) {
    %c0_i32 = arith.constant 0 : i32
    %c0_i32_0 = arith.constant 0 : i32
    %c0_i32_1 = arith.constant 0 : i32
    return %c0_i32, %c0_i32_0 : i32, i32
  }
  func.func @transform_7(%arg0: i32) -> (i32, i32) {
    %c0_i32 = arith.constant 0 : i32
    %c0_i32_0 = arith.constant 0 : i32
    return %arg0, %c0_i32 : i32, i32
  }
}

</mosaic_0001>

<llo_original>
// kernel: tpu_custom_call.1
$region0: #{tpu_custom_call.1}
  #allocation0 [shape = 'u32[]', space=smem, size = 0x4, offset = 0x4, fixed_abs, tag = 'smem constant byte address 0x4 - core index']
  #allocation1 [shape = 'u32[72,128]{1,0:T(1,128)}', space=vmem, size = 0x9000, scoped, tag = 'internal scratch']
  %s0 = inlined_call_operand.vmem [shape: f32[256,2], index: 0, kind: input, shape index: {}]
  %s1 = inlined_call_operand.vmem [shape: f32[1,256], index: 1, kind: input, shape index: {}]
  %s2 = inlined_call_operand.vmem [shape: f32[1,256], index: 2, kind: input, shape index: {}]
  %s3 = inlined_call_operand.vmem [shape: f32[1,256], index: 3, kind: input, shape index: {}]
  %s4 = inlined_call_operand.vmem [shape: f32[1,256], index: 4, kind: input, shape index: {}]
  %s5 = inlined_call_operand.vmem [shape: bf16[256,128], index: 5, kind: input, shape index: {}]
  %s6 = inlined_call_operand.vmem [shape: f32[1,128], index: 6, kind: input, shape index: {}]
  %s7 = inlined_call_operand.hbm [shape: bf16[256,256], index: 7, kind: output, shape index: {}]
  %s8 = sld [smem:[#allocation0]]
  $region61: #{tpu_custom_call.1} parent=0
    _
  %s10 = ssub.s32 1, %s8
  %s11 = scalar_select 0, %s10, %s8
  $region1: #{tpu_custom_call.1} parent=0
    #allocation2 [shape = 'u8[131072]{0}', space=vmem, size = 0x20000, scoped, tag = 'output window, operand 0']
    #allocation3 [shape = 's32[2]{0}', space=sflag, size = 0x8, scoped, tag = 'scoped memory for tpu_custom_call.1']
    %12 = vsyncpa [#allocation3], 0
    %s13 = scalar_lea.sflag [#allocation3], 1
    %14 = vsyncpa %s13, 0
    loop: start=0, step=1, limit=4
    $region2: #{tpu_custom_call.1} parent=1 // loop_pre_header
      _
    $region3: #{tpu_custom_call.1} parent=1 // loop_header
      %s16 = sphi 0, %s20
      %p17 = scmp.ge.s32.totalorder %s16, 4
      %s26 = sphi 0, %s28
      %s29 = sphi 0, %s26
      %s30 = sphi 0, %s29
      %s46 = sphi 0, %s30
      %s50 = sphi 0, %s50
      %s52 = sphi 0, %s50
      %s53 = sphi 0, %s52
      %s67 = sphi 0, %s53
      %s71 = sphi 0, %s71
      %s73 = sphi 0, %s71
      %s74 = sphi 0, %s73
      %s88 = sphi 0, %s74
      %s92 = sphi 0, %s92
      %s94 = sphi 0, %s92
      %s95 = sphi 0, %s94
      %s109 = sphi 0, %s95
      %s113 = sphi 0, %s113
      %s115 = sphi 0, %s113
      %s116 = sphi 0, %s115
      %s130 = sphi 0, %s116
      %s134 = sphi 0, %s134
      %s136 = sphi 0, %s134
      %s137 = sphi 0, %s136
      %s151 = sphi 0, %s137
      %s155 = sphi 0, %s155
      %s157 = sphi 0, %s155
      %s158 = sphi 0, %s157
      %s172 = sphi 0, %s158
      %s178 = sphi 0, %s180
      %s181 = sphi 0, %s178
      %s182 = sphi 0, %s181
      %s198 = sphi 0, %s182
    $region4: #{tpu_custom_call.1} parent=1 // loop_header_branch
      %19 = sbr.rel (%p17) target = $region8
    $region5: #{tpu_custom_call.1} parent=1 // loop_body
      %s21 = ssub.s32 %s16, 1
      %s22 = ssub.s32 %s16, 2
      %s23 = sadd.s32 %s16, 1
      %s24 = ssub.s32 %s16, %s23
      %p25 = scmp.eq.s32.totalorder %s24, 0
      %s27 = sadd.s32 %s26, 1
      %s28 = scalar_select %p25, %s26, %s27
      %p31 = pneg %p25
      %p32 = scmp.eq.s32.totalorder %s16, 1
      %p33 = por %p31, %p32
      %p34 = scmp.ne.s32.totalorder %s26, %s29
      %p35 = scmp.eq.s32.totalorder %s16, 0
      %p36 = por %p34, %p35
      %p37 = scmp.ne.s32.totalorder %s26, %s29
      %p38 = scmp.eq.s32.totalorder %s21, 1
      %p39 = por %p37, %p38
      %p40 = scmp.ne.s32.totalorder %s29, %s30
      %p41 = scmp.eq.s32.totalorder %s21, 0
      %p42 = por %p40, %p41
      %p43 = scmp.ne.s32.totalorder %s29, %s30
      %p44 = scmp.eq.s32.totalorder %s22, 1
      %p45 = por %p43, %p44
      %p47 = scmp.ne.s32.totalorder %s30, %s46
      %p48 = scmp.eq.s32.totalorder %s22, 0
      %p49 = por %p47, %p48
      %s51 = sadd.s32 %s50, 1
      %p54 = scmp.eq.s32.totalorder %s16, 1
      %p55 = scmp.ne.s32.totalorder %s50, %s52
      %p56 = scmp.eq.s32.totalorder %s16, 0
      %p57 = por %p55, %p56
      %p58 = scmp.ne.s32.totalorder %s50, %s52
      %p59 = scmp.eq.s32.totalorder %s21, 1
      %p60 = por %p58, %p59
      %p61 = scmp.ne.s32.totalorder %s52, %s53
      %p62 = scmp.eq.s32.totalorder %s21, 0
      %p63 = por %p61, %p62
      %p64 = scmp.ne.s32.totalorder %s52, %s53
      %p65 = scmp.eq.s32.totalorder %s22, 1
      %p66 = por %p64, %p65
      %p68 = scmp.ne.s32.totalorder %s53, %s67
      %p69 = scmp.eq.s32.totalorder %s22, 0
      %p70 = por %p68, %p69
      %s72 = sadd.s32 %s71, 1
      %p75 = scmp.eq.s32.totalorder %s16, 1
      %p76 = scmp.ne.s32.totalorder %s71, %s73
      %p77 = scmp.eq.s32.totalorder %s16, 0
      %p78 = por %p76, %p77
      %p79 = scmp.ne.s32.totalorder %s71, %s73
      %p80 = scmp.eq.s32.totalorder %s21, 1
      %p81 = por %p79, %p80
      %p82 = scmp.ne.s32.totalorder %s73, %s74
      %p83 = scmp.eq.s32.totalorder %s21, 0
      %p84 = por %p82, %p83
      %p85 = scmp.ne.s32.totalorder %s73, %s74
      %p86 = scmp.eq.s32.totalorder %s22, 1
      %p87 = por %p85, %p86
      %p89 = scmp.ne.s32.totalorder %s74, %s88
      %p90 = scmp.eq.s32.totalorder %s22, 0
      %p91 = por %p89, %p90
      %s93 = sadd.s32 %s92, 1
      %p96 = scmp.eq.s32.totalorder %s16, 1
      %p97 = scmp.ne.s32.totalorder %s92, %s94
      %p98 = scmp.eq.s32.totalorder %s16, 0
      %p99 = por %p97, %p98
      %p100 = scmp.ne.s32.totalorder %s92, %s94
      %p101 = scmp.eq.s32.totalorder %s21, 1
      %p102 = por %p100, %p101
      %p103 = scmp.ne.s32.totalorder %s94, %s95
      %p104 = scmp.eq.s32.totalorder %s21, 0
      %p105 = por %p103, %p104
      %p106 = scmp.ne.s32.totalorder %s94, %s95
      %p107 = scmp.eq.s32.totalorder %s22, 1
      %p108 = por %p106, %p107
      %p110 = scmp.ne.s32.totalorder %s95, %s109
      %p111 = scmp.eq.s32.totalorder %s22, 0
      %p112 = por %p110, %p111
      %s114 = sadd.s32 %s113, 1
      %p117 = scmp.eq.s32.totalorder %s16, 1
      %p118 = scmp.ne.s32.totalorder %s113, %s115
      %p119 = scmp.eq.s32.totalorder %s16, 0
      %p120 = por %p118, %p119
      %p121 = scmp.ne.s32.totalorder %s113, %s115
      %p122 = scmp.eq.s32.totalorder %s21, 1
      %p123 = por %p121, %p122
      %p124 = scmp.ne.s32.totalorder %s115, %s116
      %p125 = scmp.eq.s32.totalorder %s21, 0
      %p126 = por %p124, %p125
      %p127 = scmp.ne.s32.totalorder %s115, %s116
      %p128 = scmp.eq.s32.totalorder %s22, 1
      %p129 = por %p127, %p128
      %p131 = scmp.ne.s32.totalorder %s116, %s130
      %p132 = scmp.eq.s32.totalorder %s22, 0
      %p133 = por %p131, %p132
      %s135 = sadd.s32 %s134, 1
      %p138 = scmp.eq.s32.totalorder %s16, 1
      %p139 = scmp.ne.s32.totalorder %s134, %s136
      %p140 = scmp.eq.s32.totalorder %s16, 0
      %p141 = por %p139, %p140
      %p142 = scmp.ne.s32.totalorder %s134, %s136
      %p143 = scmp.eq.s32.totalorder %s21, 1
      %p144 = por %p142, %p143
      %p145 = scmp.ne.s32.totalorder %s136, %s137
      %p146 = scmp.eq.s32.totalorder %s21, 0
      %p147 = por %p145, %p146
      %p148 = scmp.ne.s32.totalorder %s136, %s137
      %p149 = scmp.eq.s32.totalorder %s22, 1
      %p150 = por %p148, %p149
      %p152 = scmp.ne.s32.totalorder %s137, %s151
      %p153 = scmp.eq.s32.totalorder %s22, 0
      %p154 = por %p152, %p153
      %s156 = sadd.s32 %s155, 1
      %p159 = scmp.eq.s32.totalorder %s16, 1
      %p160 = scmp.ne.s32.totalorder %s155, %s157
      %p161 = scmp.eq.s32.totalorder %s16, 0
      %p162 = por %p160, %p161
      %p163 = scmp.ne.s32.totalorder %s155, %s157
      %p164 = scmp.eq.s32.totalorder %s21, 1
      %p165 = por %p163, %p164
      %p166 = scmp.ne.s32.totalorder %s157, %s158
      %p167 = scmp.eq.s32.totalorder %s21, 0
      %p168 = por %p166, %p167
      %p169 = scmp.ne.s32.totalorder %s157, %s158
      %p170 = scmp.eq.s32.totalorder %s22, 1
      %p171 = por %p169, %p170
      %p173 = scmp.ne.s32.totalorder %s158, %s172
      %p174 = scmp.eq.s32.totalorder %s22, 0
      %p175 = por %p173, %p174
      %s176 = ssub.s32 %s16, %s23
      %p177 = scmp.eq.s32.totalorder %s176, 0
      %s179 = sadd.s32 %s178, 1
      %s180 = scalar_select %p177, %s178, %s179
      %p183 = pneg %p177
      %p184 = scmp.eq.s32.totalorder %s16, 1
      %p185 = por %p183, %p184
      %p186 = scmp.ne.s32.totalorder %s178, %s181
      %p187 = scmp.eq.s32.totalorder %s16, 0
      %p188 = por %p186, %p187
      %p189 = scmp.ne.s32.totalorder %s178, %s181
      %p190 = scmp.eq.s32.totalorder %s21, 1
      %p191 = por %p189, %p190
      %p192 = scmp.ne.s32.totalorder %s181, %s182
      %p193 = scmp.eq.s32.totalorder %s21, 0
      %p194 = por %p192, %p193
      %p195 = scmp.ne.s32.totalorder %s181, %s182
      %p196 = scmp.eq.s32.totalorder %s22, 1
      %p197 = por %p195, %p196
      %p199 = scmp.ne.s32.totalorder %s182, %s198
      %p200 = scmp.eq.s32.totalorder %s22, 0
      %p201 = por %p199, %p200
      %p202 = scmp.le.s32.totalorder 1, %s16
      %p203 = scmp.lt.s32.totalorder %s16, 3
      %p204 = pnand %p202, %p203
      %p205 = pneg %p204
      // Predicated region
      $region9: #{tpu_custom_call.1} parent=5 // pred_check
        _
      $region10: #{tpu_custom_call.1} parent=5 // pred_check_branch
        %207 = sbr.rel (%p204) target = $region12
      $region11: #{tpu_custom_call.1} parent=5 // pred_region
        %s208 = ssub.s32 %s16, 1
        // Predicated region
        $region13: #{tpu_custom_call.1} parent=11 // pred_check
          %p209 = pneg %p63
        $region14: #{tpu_custom_call.1} parent=11 // pred_check_branch
          %211 = sbr.rel (%p209) target = $region16
        $region15: #{tpu_custom_call.1} parent=11 // pred_region
          _
        $region16: #{tpu_custom_call.1} parent=11 // pred_fallthru
          _
        // Predicated region
        $region17: #{tpu_custom_call.1} parent=11 // pred_check
          %p212 = pneg %p84
        $region18: #{tpu_custom_call.1} parent=11 // pred_check_branch
          %214 = sbr.rel (%p212) target = $region20
        $region19: #{tpu_custom_call.1} parent=11 // pred_region
          _
        $region20: #{tpu_custom_call.1} parent=11 // pred_fallthru
          _
        // Predicated region
        $region21: #{tpu_custom_call.1} parent=11 // pred_check
          %p215 = pneg %p105
        $region22: #{tpu_custom_call.1} parent=11 // pred_check_branch
          %217 = sbr.rel (%p215) target = $region24
        $region23: #{tpu_custom_call.1} parent=11 // pred_region
          _
        $region24: #{tpu_custom_call.1} parent=11 // pred_fallthru
          _
        // Predicated region
        $region25: #{tpu_custom_call.1} parent=11 // pred_check
          %p218 = pneg %p126
        $region26: #{tpu_custom_call.1} parent=11 // pred_check_branch
          %220 = sbr.rel (%p218) target = $region28
        $region27: #{tpu_custom_call.1} parent=11 // pred_region
          _
        $region28: #{tpu_custom_call.1} parent=11 // pred_fallthru
          _
        // Predicated region
        $region29: #{tpu_custom_call.1} parent=11 // pred_check
          %p221 = pneg %p147
        $region30: #{tpu_custom_call.1} parent=11 // pred_check_branch
          %223 = sbr.rel (%p221) target = $region32
        $region31: #{tpu_custom_call.1} parent=11 // pred_region
          _
        $region32: #{tpu_custom_call.1} parent=11 // pred_fallthru
          _
        // Predicated region
        $region33: #{tpu_custom_call.1} parent=11 // pred_check
          %p224 = pneg %p168
        $region34: #{tpu_custom_call.1} parent=11 // pred_check_branch
          %226 = sbr.rel (%p224) target = $region36
        $region35: #{tpu_custom_call.1} parent=11 // pred_region
          _
        $region36: #{tpu_custom_call.1} parent=11 // pred_fallthru
          _
      $region12: #{tpu_custom_call.1} parent=5 // pred_fallthru
        _
      %p227 = scmp.lt.s32.totalorder %s16, 2
      // Predicated region
      $region37: #{tpu_custom_call.1} parent=5 // pred_check
        %p228 = pneg %p227
      $region38: #{tpu_custom_call.1} parent=5 // pred_check_branch
        %230 = sbr.rel (%p228) target = $region40
      $region39: #{tpu_custom_call.1} parent=5 // pred_region
        // Predicated region
        $region41: #{tpu_custom_call.1} parent=39 // pred_check
          %p231 = pneg %p36
        $region42: #{tpu_custom_call.1} parent=39 // pred_check_branch
          %233 = sbr.rel (%p231) target = $region44
        $region43: #{tpu_custom_call.1} parent=39 // pred_region
          %s234 = smul.u32 16, %s16
          %p235 = scmp.lt.s32.totalorder %s234, 31
          %s236 = scalar_select %p235, %s234, 31
          %s237 = smul.addr %s236, 8
          %s238 = scalar_lea.vmem %s0, %s237
          %s239 = smul.u32 16, %s16
        $region44: #{tpu_custom_call.1} parent=39 // pred_fallthru
          _
      $region40: #{tpu_custom_call.1} parent=5 // pred_fallthru
        _
      %p240 = scmp.le.s32.totalorder 1, %s16
      %p241 = scmp.lt.s32.totalorder %s16, 3
      %p242 = pnand %p240, %p241
      %p243 = pneg %p242
      // Predicated region
      $region45: #{tpu_custom_call.1} parent=5 // pred_check
        _
      $region46: #{tpu_custom_call.1} parent=5 // pred_check_branch
        %245 = sbr.rel (%p242) target = $region48
      $region47: #{tpu_custom_call.1} parent=5 // pred_region
        %s246 = ssub.s32 %s16, 1
        %s247 = smul.u32 16, %s21
        %p248 = scmp.lt.s32.totalorder %s247, 31
        %s249 = scalar_select %p248, %s247, 31
        %s250 = smul.addr %s249, 8
        %s251 = scalar_lea.vmem %s0, %s250
        %p252 = pneg %p42
        %p253 = pneg %p39
        %p254 = pneg %p63
        %p255 = pneg %p60
        %p256 = pneg %p84
        %p257 = pneg %p81
        %p258 = pneg %p105
        %p259 = pneg %p102
        %p260 = pneg %p126
        %p261 = pneg %p123
        %p262 = pneg %p147
        %p263 = pneg %p144
        %p264 = pneg %p168
        %p265 = pneg %p165
        %p266 = pneg %p194
        %p267 = pneg %p191
        %s268 = sand.u32 %s181, 1
        %s269 = scalar_lea.sflag [#allocation3], %s268
        %s270 = sand.u32 %s181, 1
        %s271 = smul.addr %s270, 128
        %s272 = scalar_lea.vmem [#allocation2], %s271
        %s273 = smul.u32 16, %s21
        %p274 = scmp.lt.s32.totalorder %s273, 31
        %s275 = scalar_select %p274, %s273, 31
        %s276 = smul.addr %s275, 8
        %s277 = scalar_lea.vmem %s0, %s276
        %s278 = smul.u32 16, %s21
        %s279 = smul.u32 16, %s21
        %v280 = vld [vmem:[%s277] sm:$0xff]
        %v281 = vld [vmem:[%s277 + $0x8] sm:$0xff]
        %v282 = vld [vmem:[%s277 + $0x10] sm:$0xff]
        %v283 = vld [vmem:[%s277 + $0x18] sm:$0xff]
        %v284 = vld [vmem:[%s277 + $0x20] sm:$0xff]
        %v285 = vld [vmem:[%s277 + $0x28] sm:$0xff]
        %v286 = vld [vmem:[%s277 + $0x30] sm:$0xff]
        %v287 = vld [vmem:[%s277 + $0x38] sm:$0xff]
        %v288 = vld [vmem:[%s277 + $0x40] sm:$0xff]
        %v289 = vld [vmem:[%s277 + $0x48] sm:$0xff]
        %v290 = vld [vmem:[%s277 + $0x50] sm:$0xff]
        %v291 = vld [vmem:[%s277 + $0x58] sm:$0xff]
        %v292 = vld [vmem:[%s277 + $0x60] sm:$0xff]
        %v293 = vld [vmem:[%s277 + $0x68] sm:$0xff]
        %v294 = vld [vmem:[%s277 + $0x70] sm:$0xff]
        %v295 = vld [vmem:[%s277 + $0x78] sm:$0xff]
        %v296 = vld [vmem:[%s5] sm:$0xf]
        %v297 = vld [vmem:[%s5 + $0x4] sm:$0xf]
        %v298 = vld [vmem:[%s5 + $0x8] sm:$0xf]
        %v299 = vld [vmem:[%s5 + $0xc] sm:$0xf]
        %v300 = vld [vmem:[%s5 + $0x10] sm:$0xf]
        %v301 = vld [vmem:[%s5 + $0x14] sm:$0xf]
        %v302 = vld [vmem:[%s5 + $0x18] sm:$0xf]
        %v303 = vld [vmem:[%s5 + $0x1c] sm:$0xf]
        %v304 = vld [vmem:[%s5 + $0x20] sm:$0xf]
        %v305 = vld [vmem:[%s5 + $0x24] sm:$0xf]
        %v306 = vld [vmem:[%s5 + $0x28] sm:$0xf]
        %v307 = vld [vmem:[%s5 + $0x2c] sm:$0xf]
        %v308 = vld [vmem:[%s5 + $0x30] sm:$0xf]
        %v309 = vld [vmem:[%s5 + $0x34] sm:$0xf]
        %v310 = vld [vmem:[%s5 + $0x38] sm:$0xf]
        %v311 = vld [vmem:[%s5 + $0x3c] sm:$0xf]
        %v312 = vld [vmem:[%s5 + $0x40] sm:$0xf]
        %v313 = vld [vmem:[%s5 + $0x44] sm:$0xf]
        %v314 = vld [vmem:[%s5 + $0x48] sm:$0xf]
        %v315 = vld [vmem:[%s5 + $0x4c] sm:$0xf]
        %v316 = vld [vmem:[%s5 + $0x50] sm:$0xf]
        %v317 = vld [vmem:[%s5 + $0x54] sm:$0xf]
        %v318 = vld [vmem:[%s5 + $0x58] sm:$0xf]
        %v319 = vld [vmem:[%s5 + $0x5c] sm:$0xf]
        %v320 = vld [vmem:[%s5 + $0x60] sm:$0xf]
        %v321 = vld [vmem:[%s5 + $0x64] sm:$0xf]
        %v322 = vld [vmem:[%s5 + $0x68] sm:$0xf]
        %v323 = vld [vmem:[%s5 + $0x6c] sm:$0xf]
        %v324 = vld [vmem:[%s5 + $0x70] sm:$0xf]
        %v325 = vld [vmem:[%s5 + $0x74] sm:$0xf]
        %v326 = vld [vmem:[%s5 + $0x78] sm:$0xf]
        %v327 = vld [vmem:[%s5 + $0x7c] sm:$0xf]
        %v328 = vld [vmem:[%s1] sm:$0x3]
        %330 = vset.pattern.permute.xlu0 0
        %331 = vperm.xlu0 %330, %v280
        %v332 = vpop.permute.xlu0 %331
        %335 = vset.pattern.permute.xlu0 0
        %336 = vperm.xlu0 %335, %v281
        %v337 = vpop.permute.xlu0 %336
        %340 = vset.pattern.permute.xlu0 0
        %341 = vperm.xlu0 %340, %v282
        %v342 = vpop.permute.xlu0 %341
        %345 = vset.pattern.permute.xlu0 0
        %346 = vperm.xlu0 %345, %v283
        %v347 = vpop.permute.xlu0 %346
        %350 = vset.pattern.permute.xlu0 0
        %351 = vperm.xlu0 %350, %v284
        %v352 = vpop.permute.xlu0 %351
        %355 = vset.pattern.permute.xlu0 0
        %356 = vperm.xlu0 %355, %v285
        %v357 = vpop.permute.xlu0 %356
        %360 = vset.pattern.permute.xlu0 0
        %361 = vperm.xlu0 %360, %v286
        %v362 = vpop.permute.xlu0 %361
        %365 = vset.pattern.permute.xlu0 0
        %366 = vperm.xlu0 %365, %v287
        %v367 = vpop.permute.xlu0 %366
        %370 = vset.pattern.permute.xlu0 0
        %371 = vperm.xlu0 %370, %v288
        %v372 = vpop.permute.xlu0 %371
        %375 = vset.pattern.permute.xlu0 0
        %376 = vperm.xlu0 %375, %v289
        %v377 = vpop.permute.xlu0 %376
        %380 = vset.pattern.permute.xlu0 0
        %381 = vperm.xlu0 %380, %v290
        %v382 = vpop.permute.xlu0 %381
        %385 = vset.pattern.permute.xlu0 0
        %386 = vperm.xlu0 %385, %v291
        %v387 = vpop.permute.xlu0 %386
        %390 = vset.pattern.permute.xlu0 0
        %391 = vperm.xlu0 %390, %v292
        %v392 = vpop.permute.xlu0 %391
        %395 = vset.pattern.permute.xlu0 0
        %396 = vperm.xlu0 %395, %v293
        %v397 = vpop.permute.xlu0 %396
        %400 = vset.pattern.permute.xlu0 0
        %401 = vperm.xlu0 %400, %v294
        %v402 = vpop.permute.xlu0 %401
        %405 = vset.pattern.permute.xlu0 0
        %406 = vperm.xlu0 %405, %v295
        %v407 = vpop.permute.xlu0 %406
        %v410 = vperm.slane %v328, 0
        %v411 = vperm.slane %v328, 1
        %v414 = vmul.f32 %v332, %v410
        %v415 = vmul.f32 %v332, %v411
        %v416 = vmul.f32 %v337, %v410
        %v417 = vmul.f32 %v337, %v411
        %v418 = vmul.f32 %v342, %v410
        %v419 = vmul.f32 %v342, %v411
        %v420 = vmul.f32 %v347, %v410
        %v421 = vmul.f32 %v347, %v411
        %v422 = vmul.f32 %v352, %v410
        %v423 = vmul.f32 %v352, %v411
        %v424 = vmul.f32 %v357, %v410
        %v425 = vmul.f32 %v357, %v411
        %v426 = vmul.f32 %v362, %v410
        %v427 = vmul.f32 %v362, %v411
        %v428 = vmul.f32 %v367, %v410
        %v429 = vmul.f32 %v367, %v411
        %v430 = vmul.f32 %v372, %v410
        %v431 = vmul.f32 %v372, %v411
        %v432 = vmul.f32 %v377, %v410
        %v433 = vmul.f32 %v377, %v411
        %v434 = vmul.f32 %v382, %v410
        %v435 = vmul.f32 %v382, %v411
        %v436 = vmul.f32 %v387, %v410
        %v437 = vmul.f32 %v387, %v411
        %v438 = vmul.f32 %v392, %v410
        %v439 = vmul.f32 %v392, %v411
        %v440 = vmul.f32 %v397, %v410
        %v441 = vmul.f32 %v397, %v411
        %v442 = vmul.f32 %v402, %v410
        %v443 = vmul.f32 %v402, %v411
        %v444 = vmul.f32 %v407, %v410
        %v445 = vmul.f32 %v407, %v411
        %v446 = vld [vmem:[%s2] sm:$0x3]
        %v448 = vperm.slane %v446, 0
        %v449 = vperm.slane %v446, 1
        %v452 = vadd.f32 %v414, %v448
        %v453 = vadd.f32 %v415, %v449
        %v454 = vadd.f32 %v416, %v448
        %v455 = vadd.f32 %v417, %v449
        %v456 = vadd.f32 %v418, %v448
        %v457 = vadd.f32 %v419, %v449
        %v458 = vadd.f32 %v420, %v448
        %v459 = vadd.f32 %v421, %v449
        %v460 = vadd.f32 %v422, %v448
        %v461 = vadd.f32 %v423, %v449
        %v462 = vadd.f32 %v424, %v448
        %v463 = vadd.f32 %v425, %v449
        %v464 = vadd.f32 %v426, %v448
        %v465 = vadd.f32 %v427, %v449
        %v466 = vadd.f32 %v428, %v448
        %v467 = vadd.f32 %v429, %v449
        %v468 = vadd.f32 %v430, %v448
        %v469 = vadd.f32 %v431, %v449
        %v470 = vadd.f32 %v432, %v448
        %v471 = vadd.f32 %v433, %v449
        %v472 = vadd.f32 %v434, %v448
        %v473 = vadd.f32 %v435, %v449
        %v474 = vadd.f32 %v436, %v448
        %v475 = vadd.f32 %v437, %v449
        %v476 = vadd.f32 %v438, %v448
        %v477 = vadd.f32 %v439, %v449
        %v478 = vadd.f32 %v440, %v448
        %v479 = vadd.f32 %v441, %v449
        %v480 = vadd.f32 %v442, %v448
        %v481 = vadd.f32 %v443, %v449
        %v482 = vadd.f32 %v444, %v448
        %v483 = vadd.f32 %v445, %v449
        %v484 = vld [vmem:[%s3] sm:$0x3]
        %v486 = vperm.slane %v484, 0
        %v487 = vperm.slane %v484, 1
        %v490 = vmul.f32 %v452, %v486
        %v491 = vmul.f32 %v453, %v487
        %v492 = vmul.f32 %v454, %v486
        %v493 = vmul.f32 %v455, %v487
        %v494 = vmul.f32 %v456, %v486
        %v495 = vmul.f32 %v457, %v487
        %v496 = vmul.f32 %v458, %v486
        %v497 = vmul.f32 %v459, %v487
        %v498 = vmul.f32 %v460, %v486
        %v499 = vmul.f32 %v461, %v487
        %v500 = vmul.f32 %v462, %v486
        %v501 = vmul.f32 %v463, %v487
        %v502 = vmul.f32 %v464, %v486
        %v503 = vmul.f32 %v465, %v487
        %v504 = vmul.f32 %v466, %v486
        %v505 = vmul.f32 %v467, %v487
        %v506 = vmul.f32 %v468, %v486
        %v507 = vmul.f32 %v469, %v487
        %v508 = vmul.f32 %v470, %v486
        %v509 = vmul.f32 %v471, %v487
        %v510 = vmul.f32 %v472, %v486
        %v511 = vmul.f32 %v473, %v487
        %v512 = vmul.f32 %v474, %v486
        %v513 = vmul.f32 %v475, %v487
        %v514 = vmul.f32 %v476, %v486
        %v515 = vmul.f32 %v477, %v487
        %v516 = vmul.f32 %v478, %v486
        %v517 = vmul.f32 %v479, %v487
        %v518 = vmul.f32 %v480, %v486
        %v519 = vmul.f32 %v481, %v487
        %v520 = vmul.f32 %v482, %v486
        %v521 = vmul.f32 %v483, %v487
        %v522 = vld [vmem:[%s4] sm:$0x3]
        %v524 = vperm.slane %v522, 0
        %v525 = vperm.slane %v522, 1
        %v528 = vadd.f32 %v490, %v524
        %v529 = vadd.f32 %v491, %v525
        %v530 = vadd.f32 %v492, %v524
        %v531 = vadd.f32 %v493, %v525
        %v532 = vadd.f32 %v494, %v524
        %v533 = vadd.f32 %v495, %v525
        %v534 = vadd.f32 %v496, %v524
        %v535 = vadd.f32 %v497, %v525
        %v536 = vadd.f32 %v498, %v524
        %v537 = vadd.f32 %v499, %v525
        %v538 = vadd.f32 %v500, %v524
        %v539 = vadd.f32 %v501, %v525
        %v540 = vadd.f32 %v502, %v524
        %v541 = vadd.f32 %v503, %v525
        %v542 = vadd.f32 %v504, %v524
        %v543 = vadd.f32 %v505, %v525
        %v544 = vadd.f32 %v506, %v524
        %v545 = vadd.f32 %v507, %v525
        %v546 = vadd.f32 %v508, %v524
        %v547 = vadd.f32 %v509, %v525
        %v548 = vadd.f32 %v510, %v524
        %v549 = vadd.f32 %v511, %v525
        %v550 = vadd.f32 %v512, %v524
        %v551 = vadd.f32 %v513, %v525
        %v552 = vadd.f32 %v514, %v524
        %v553 = vadd.f32 %v515, %v525
        %v554 = vadd.f32 %v516, %v524
        %v555 = vadd.f32 %v517, %v525
        %v556 = vadd.f32 %v518, %v524
        %v557 = vadd.f32 %v519, %v525
        %v558 = vadd.f32 %v520, %v524
        %v559 = vadd.f32 %v521, %v525
        %v560 = vmax.f32 %v528, 0.0
        %v561 = vmax.f32 %v529, 0.0
        %v562 = vmax.f32 %v530, 0.0
        %v563 = vmax.f32 %v531, 0.0
        %v564 = vmax.f32 %v532, 0.0
        %v565 = vmax.f32 %v533, 0.0
        %v566 = vmax.f32 %v534, 0.0
        %v567 = vmax.f32 %v535, 0.0
        %v568 = vmax.f32 %v536, 0.0
        %v569 = vmax.f32 %v537, 0.0
        %v570 = vmax.f32 %v538, 0.0
        %v571 = vmax.f32 %v539, 0.0
        %v572 = vmax.f32 %v540, 0.0
        %v573 = vmax.f32 %v541, 0.0
        %v574 = vmax.f32 %v542, 0.0
        %v575 = vmax.f32 %v543, 0.0
        %v576 = vmax.f32 %v544, 0.0
        %v577 = vmax.f32 %v545, 0.0
        %v578 = vmax.f32 %v546, 0.0
        %v579 = vmax.f32 %v547, 0.0
        %v580 = vmax.f32 %v548, 0.0
        %v581 = vmax.f32 %v549, 0.0
        %v582 = vmax.f32 %v550, 0.0
        %v583 = vmax.f32 %v551, 0.0
        %v584 = vmax.f32 %v552, 0.0
        %v585 = vmax.f32 %v553, 0.0
        %v586 = vmax.f32 %v554, 0.0
        %v587 = vmax.f32 %v555, 0.0
        %v588 = vmax.f32 %v556, 0.0
        %v589 = vmax.f32 %v557, 0.0
        %v590 = vmax.f32 %v558, 0.0
        %v591 = vmax.f32 %v559, 0.0
        %v592 = vpack.c.bf16 %v562, %v560
        %v593 = vpack.c.bf16 %v563, %v561
        %v594 = vpack.c.bf16 %v566, %v564
        %v595 = vpack.c.bf16 %v567, %v565
        %v596 = vpack.c.bf16 %v570, %v568
        %v597 = vpack.c.bf16 %v571, %v569
        %v598 = vpack.c.bf16 %v574, %v572
        %v599 = vpack.c.bf16 %v575, %v573
        %v600 = vpack.c.bf16 %v578, %v576
        %v601 = vpack.c.bf16 %v579, %v577
        %v602 = vpack.c.bf16 %v582, %v580
        %v603 = vpack.c.bf16 %v583, %v581
        %v604 = vpack.c.bf16 %v586, %v584
        %v605 = vpack.c.bf16 %v587, %v585
        %v606 = vpack.c.bf16 %v590, %v588
        %v607 = vpack.c.bf16 %v591, %v589
        %v608 = vld [vmem:[%s6] sm:$0x1]
        %v610 = vperm.slane %v608, 0
        %v644 = vunpack.c.l.b16 %v296
        %v645 = vunpack.c.l.b16 %v297
        %v646 = vunpack.c.l.b16 %v298
        %v647 = vunpack.c.l.b16 %v299
        %v648 = vunpack.c.l.b16 %v300
        %v649 = vunpack.c.l.b16 %v301
        %v650 = vunpack.c.l.b16 %v302
        %v651 = vunpack.c.l.b16 %v303
        %v652 = vunpack.c.l.b16 %v304
        %v653 = vunpack.c.l.b16 %v305
        %v654 = vunpack.c.l.b16 %v306
        %v655 = vunpack.c.l.b16 %v307
        %v656 = vunpack.c.l.b16 %v308
        %v657 = vunpack.c.l.b16 %v309
        %v658 = vunpack.c.l.b16 %v310
        %v659 = vunpack.c.l.b16 %v311
        %v660 = vunpack.c.l.b16 %v312
        %v661 = vunpack.c.l.b16 %v313
        %v662 = vunpack.c.l.b16 %v314
        %v663 = vunpack.c.l.b16 %v315
        %v664 = vunpack.c.l.b16 %v316
        %v665 = vunpack.c.l.b16 %v317
        %v666 = vunpack.c.l.b16 %v318
        %v667 = vunpack.c.l.b16 %v319
        %v668 = vunpack.c.l.b16 %v320
        %v669 = vunpack.c.l.b16 %v321
        %v670 = vunpack.c.l.b16 %v322
        %v671 = vunpack.c.l.b16 %v323
        %v672 = vunpack.c.l.b16 %v324
        %v673 = vunpack.c.l.b16 %v325
        %v674 = vunpack.c.l.b16 %v326
        %v675 = vunpack.c.l.b16 %v327
        %v676 = vpack.c.b16 %v645, %v644
        %v677 = vpack.c.b16 %v647, %v646
        %v678 = vpack.c.b16 %v649, %v648
        %v679 = vpack.c.b16 %v651, %v650
        %v680 = vpack.c.b16 %v653, %v652
        %v681 = vpack.c.b16 %v655, %v654
        %v682 = vpack.c.b16 %v657, %v656
        %v683 = vpack.c.b16 %v659, %v658
        %v684 = vpack.c.b16 %v661, %v660
        %v685 = vpack.c.b16 %v663, %v662
        %v686 = vpack.c.b16 %v665, %v664
        %v687 = vpack.c.b16 %v667, %v666
        %v688 = vpack.c.b16 %v669, %v668
        %v689 = vpack.c.b16 %v671, %v670
        %v690 = vpack.c.b16 %v673, %v672
        %v691 = vpack.c.b16 %v675, %v674
        %708 = vmatpush.bf16.msra.mxu0 %v683
        %709 = vmatpush.bf16.msra.mxu0 %v682
        %710 = vmatpush.bf16.msra.mxu0 %v681
        %711 = vmatpush.bf16.msra.mxu0 %v680
        %712 = vmatpush.bf16.msra.mxu0 %v679
        %713 = vmatpush.bf16.msra.mxu0 %v678
        %714 = vmatpush.bf16.msra.mxu0 %v677
        %715 = vmatpush.bf16.msra.mxu0 %v676
        %716 = vmatmul.bf16.gmra.mxu0 %v592
        %v717 = vpop.f32.mrf.mxu0
        %v718 = vadd.f32 %v610, %v717
        %v719 = vpop.f32.mrf.mxu0
        %v720 = vadd.f32 %v610, %v719
        %721 = vmatmul.bf16.gmra.mxu0 %v594
        %v722 = vpop.f32.mrf.mxu0
        %v723 = vadd.f32 %v610, %v722
        %v724 = vpop.f32.mrf.mxu0
        %v725 = vadd.f32 %v610, %v724
        %726 = vmatmul.bf16.gmra.mxu0 %v596
        %v727 = vpop.f32.mrf.mxu0
        %v728 = vadd.f32 %v610, %v727
        %v729 = vpop.f32.mrf.mxu0
        %v730 = vadd.f32 %v610, %v729
        %731 = vmatmul.bf16.gmra.mxu0 %v598
        %v732 = vpop.f32.mrf.mxu0
        %v733 = vadd.f32 %v610, %v732
        %v734 = vpop.f32.mrf.mxu0
        %v735 = vadd.f32 %v610, %v734
        %736 = vmatmul.bf16.gmra.mxu0 %v600
        %v737 = vpop.f32.mrf.mxu0
        %v738 = vadd.f32 %v610, %v737
        %v739 = vpop.f32.mrf.mxu0
        %v740 = vadd.f32 %v610, %v739
        %741 = vmatmul.bf16.gmra.mxu0 %v602
        %v742 = vpop.f32.mrf.mxu0
        %v743 = vadd.f32 %v610, %v742
        %v744 = vpop.f32.mrf.mxu0
        %v745 = vadd.f32 %v610, %v744
        %746 = vmatmul.bf16.gmra.mxu0 %v604
        %v747 = vpop.f32.mrf.mxu0
        %v748 = vadd.f32 %v610, %v747
        %v749 = vpop.f32.mrf.mxu0
        %v750 = vadd.f32 %v610, %v749
        %751 = vmatmul.bf16.gmra.mxu0 %v606
        %v752 = vpop.f32.mrf.mxu0
        %v753 = vadd.f32 %v610, %v752
        %v754 = vpop.f32.mrf.mxu0
        %v755 = vadd.f32 %v610, %v754
        %756 = vdwg.mxu0
        %757 = vmatpush.bf16.msra.mxu0 %v691
        %758 = vmatpush.bf16.msra.mxu0 %v690
        %759 = vmatpush.bf16.msra.mxu0 %v689
        %760 = vmatpush.bf16.msra.mxu0 %v688
        %761 = vmatpush.bf16.msra.mxu0 %v687
        %762 = vmatpush.bf16.msra.mxu0 %v686
        %763 = vmatpush.bf16.msra.mxu0 %v685
        %764 = vmatpush.bf16.msra.mxu0 %v684
        %765 = vmatmul.bf16.gmra.mxu0 %v593
        %v766 = vpop.f32.mrf.mxu0
        %v767 = vadd.f32 %v718, %v766
        %v768 = vpop.f32.mrf.mxu0
        %v769 = vadd.f32 %v720, %v768
        %770 = vmatmul.bf16.gmra.mxu0 %v595
        %v771 = vpop.f32.mrf.mxu0
        %v772 = vadd.f32 %v723, %v771
        %v773 = vpop.f32.mrf.mxu0
        %v774 = vadd.f32 %v725, %v773
        %775 = vmatmul.bf16.gmra.mxu0 %v597
        %v776 = vpop.f32.mrf.mxu0
        %v777 = vadd.f32 %v728, %v776
        %v778 = vpop.f32.mrf.mxu0
        %v779 = vadd.f32 %v730, %v778
        %780 = vmatmul.bf16.gmra.mxu0 %v599
        %v781 = vpop.f32.mrf.mxu0
        %v782 = vadd.f32 %v733, %v781
        %v783 = vpop.f32.mrf.mxu0
        %v784 = vadd.f32 %v735, %v783
        %785 = vmatmul.bf16.gmra.mxu0 %v601
        %v786 = vpop.f32.mrf.mxu0
        %v787 = vadd.f32 %v738, %v786
        %v788 = vpop.f32.mrf.mxu0
        %v789 = vadd.f32 %v740, %v788
        %790 = vmatmul.bf16.gmra.mxu0 %v603
        %v791 = vpop.f32.mrf.mxu0
        %v792 = vadd.f32 %v743, %v791
        %v793 = vpop.f32.mrf.mxu0
        %v794 = vadd.f32 %v745, %v793
        %795 = vmatmul.bf16.gmra.mxu0 %v605
        %v796 = vpop.f32.mrf.mxu0
        %v797 = vadd.f32 %v748, %v796
        %v798 = vpop.f32.mrf.mxu0
        %v799 = vadd.f32 %v750, %v798
        %800 = vmatmul.bf16.gmra.mxu0 %v607
        %v801 = vpop.f32.mrf.mxu0
        %v802 = vadd.f32 %v753, %v801
        %v803 = vpop.f32.mrf.mxu0
        %v804 = vadd.f32 %v755, %v803
        %805 = vdwg.mxu0
        %806 = vset.pattern.permute.xlu0 1
        %807 = vperm.xlu0 %806, %v280
        %v808 = vpop.permute.xlu0 %807
        %810 = vset.pattern.permute.xlu0 1
        %811 = vperm.xlu0 %810, %v281
        %v812 = vpop.permute.xlu0 %811
        %814 = vset.pattern.permute.xlu0 1
        %815 = vperm.xlu0 %814, %v282
        %v816 = vpop.permute.xlu0 %815
        %818 = vset.pattern.permute.xlu0 1
        %819 = vperm.xlu0 %818, %v283
        %v820 = vpop.permute.xlu0 %819
        %822 = vset.pattern.permute.xlu0 1
        %823 = vperm.xlu0 %822, %v284
        %v824 = vpop.permute.xlu0 %823
        %826 = vset.pattern.permute.xlu0 1
        %827 = vperm.xlu0 %826, %v285
        %v828 = vpop.permute.xlu0 %827
        %830 = vset.pattern.permute.xlu0 1
        %831 = vperm.xlu0 %830, %v286
        %v832 = vpop.permute.xlu0 %831
        %834 = vset.pattern.permute.xlu0 1
        %835 = vperm.xlu0 %834, %v287
        %v836 = vpop.permute.xlu0 %835
        %838 = vset.pattern.permute.xlu0 1
        %839 = vperm.xlu0 %838, %v288
        %v840 = vpop.permute.xlu0 %839
        %842 = vset.pattern.permute.xlu0 1
        %843 = vperm.xlu0 %842, %v289
        %v844 = vpop.permute.xlu0 %843
        %846 = vset.pattern.permute.xlu0 1
        %847 = vperm.xlu0 %846, %v290
        %v848 = vpop.permute.xlu0 %847
        %850 = vset.pattern.permute.xlu0 1
        %851 = vperm.xlu0 %850, %v291
        %v852 = vpop.permute.xlu0 %851
        %854 = vset.pattern.permute.xlu0 1
        %855 = vperm.xlu0 %854, %v292
        %v856 = vpop.permute.xlu0 %855
        %858 = vset.pattern.permute.xlu0 1
        %859 = vperm.xlu0 %858, %v293
        %v860 = vpop.permute.xlu0 %859
        %862 = vset.pattern.permute.xlu0 1
        %863 = vperm.xlu0 %862, %v294
        %v864 = vpop.permute.xlu0 %863
        %866 = vset.pattern.permute.xlu0 1
        %867 = vperm.xlu0 %866, %v295
        %v868 = vpop.permute.xlu0 %867
        %v870 = vmul.f32 %v808, %v410
        %v871 = vmul.f32 %v808, %v411
        %v872 = vmul.f32 %v812, %v410
        %v873 = vmul.f32 %v812, %v411
        %v874 = vmul.f32 %v816, %v410
        %v875 = vmul.f32 %v816, %v411
        %v876 = vmul.f32 %v820, %v410
        %v877 = vmul.f32 %v820, %v411
        %v878 = vmul.f32 %v824, %v410
        %v879 = vmul.f32 %v824, %v411
        %v880 = vmul.f32 %v828, %v410
        %v881 = vmul.f32 %v828, %v411
        %v882 = vmul.f32 %v832, %v410
        %v883 = vmul.f32 %v832, %v411
        %v884 = vmul.f32 %v836, %v410
        %v885 = vmul.f32 %v836, %v411
        %v886 = vmul.f32 %v840, %v410
        %v887 = vmul.f32 %v840, %v411
        %v888 = vmul.f32 %v844, %v410
        %v889 = vmul.f32 %v844, %v411
        %v890 = vmul.f32 %v848, %v410
        %v891 = vmul.f32 %v848, %v411
        %v892 = vmul.f32 %v852, %v410
        %v893 = vmul.f32 %v852, %v411
        %v894 = vmul.f32 %v856, %v410
        %v895 = vmul.f32 %v856, %v411
        %v896 = vmul.f32 %v860, %v410
        %v897 = vmul.f32 %v860, %v411
        %v898 = vmul.f32 %v864, %v410
        %v899 = vmul.f32 %v864, %v411
        %v900 = vmul.f32 %v868, %v410
        %v901 = vmul.f32 %v868, %v411
        %v902 = vadd.f32 %v870, %v448
        %v903 = vadd.f32 %v871, %v449
        %v904 = vadd.f32 %v872, %v448
        %v905 = vadd.f32 %v873, %v449
        %v906 = vadd.f32 %v874, %v448
        %v907 = vadd.f32 %v875, %v449
        %v908 = vadd.f32 %v876, %v448
        %v909 = vadd.f32 %v877, %v449
        %v910 = vadd.f32 %v878, %v448
        %v911 = vadd.f32 %v879, %v449
        %v912 = vadd.f32 %v880, %v448
        %v913 = vadd.f32 %v881, %v449
        %v914 = vadd.f32 %v882, %v448
        %v915 = vadd.f32 %v883, %v449
        %v916 = vadd.f32 %v884, %v448
        %v917 = vadd.f32 %v885, %v449
        %v918 = vadd.f32 %v886, %v448
        %v919 = vadd.f32 %v887, %v449
        %v920 = vadd.f32 %v888, %v448
        %v921 = vadd.f32 %v889, %v449
        %v922 = vadd.f32 %v890, %v448
        %v923 = vadd.f32 %v891, %v449
        %v924 = vadd.f32 %v892, %v448
        %v925 = vadd.f32 %v893, %v449
        %v926 = vadd.f32 %v894, %v448
        %v927 = vadd.f32 %v895, %v449
        %v928 = vadd.f32 %v896, %v448
        %v929 = vadd.f32 %v897, %v449
        %v930 = vadd.f32 %v898, %v448
        %v931 = vadd.f32 %v899, %v449
        %v932 = vadd.f32 %v900, %v448
        %v933 = vadd.f32 %v901, %v449
        %v934 = vmul.f32 %v902, %v486
        %v935 = vmul.f32 %v903, %v487
        %v936 = vmul.f32 %v904, %v486
        %v937 = vmul.f32 %v905, %v487
        %v938 = vmul.f32 %v906, %v486
        %v939 = vmul.f32 %v907, %v487
        %v940 = vmul.f32 %v908, %v486
        %v941 = vmul.f32 %v909, %v487
        %v942 = vmul.f32 %v910, %v486
        %v943 = vmul.f32 %v911, %v487
        %v944 = vmul.f32 %v912, %v486
        %v945 = vmul.f32 %v913, %v487
        %v946 = vmul.f32 %v914, %v486
        %v947 = vmul.f32 %v915, %v487
        %v948 = vmul.f32 %v916, %v486
        %v949 = vmul.f32 %v917, %v487
        %v950 = vmul.f32 %v918, %v486
        %v951 = vmul.f32 %v919, %v487
        %v952 = vmul.f32 %v920, %v486
        %v953 = vmul.f32 %v921, %v487
        %v954 = vmul.f32 %v922, %v486
        %v955 = vmul.f32 %v923, %v487
        %v956 = vmul.f32 %v924, %v486
        %v957 = vmul.f32 %v925, %v487
        %v958 = vmul.f32 %v926, %v486
        %v959 = vmul.f32 %v927, %v487
        %v960 = vmul.f32 %v928, %v486
        %v961 = vmul.f32 %v929, %v487
        %v962 = vmul.f32 %v930, %v486
        %v963 = vmul.f32 %v931, %v487
        %v964 = vmul.f32 %v932, %v486
        %v965 = vmul.f32 %v933, %v487
        %v966 = vadd.f32 %v934, %v524
        %v967 = vadd.f32 %v935, %v525
        %v968 = vadd.f32 %v936, %v524
        %v969 = vadd.f32 %v937, %v525
        %v970 = vadd.f32 %v938, %v524
        %v971 = vadd.f32 %v939, %v525
        %v972 = vadd.f32 %v940, %v524
        %v973 = vadd.f32 %v941, %v525
        %v974 = vadd.f32 %v942, %v524
        %v975 = vadd.f32 %v943, %v525
        %v976 = vadd.f32 %v944, %v524
        %v977 = vadd.f32 %v945, %v525
        %v978 = vadd.f32 %v946, %v524
        %v979 = vadd.f32 %v947, %v525
        %v980 = vadd.f32 %v948, %v524
        %v981 = vadd.f32 %v949, %v525
        %v982 = vadd.f32 %v950, %v524
        %v983 = vadd.f32 %v951, %v525
        %v984 = vadd.f32 %v952, %v524
        %v985 = vadd.f32 %v953, %v525
        %v986 = vadd.f32 %v954, %v524
        %v987 = vadd.f32 %v955, %v525
        %v988 = vadd.f32 %v956, %v524
        %v989 = vadd.f32 %v957, %v525
        %v990 = vadd.f32 %v958, %v524
        %v991 = vadd.f32 %v959, %v525
        %v992 = vadd.f32 %v960, %v524
        %v993 = vadd.f32 %v961, %v525
        %v994 = vadd.f32 %v962, %v524
        %v995 = vadd.f32 %v963, %v525
        %v996 = vadd.f32 %v964, %v524
        %v997 = vadd.f32 %v965, %v525
        %v998 = vmax.f32 %v966, 0.0
        %v999 = vmax.f32 %v967, 0.0
        %v1000 = vmax.f32 %v968, 0.0
        %v1001 = vmax.f32 %v969, 0.0
        %v1002 = vmax.f32 %v970, 0.0
        %v1003 = vmax.f32 %v971, 0.0
        %v1004 = vmax.f32 %v972, 0.0
        %v1005 = vmax.f32 %v973, 0.0
        %v1006 = vmax.f32 %v974, 0.0
        %v1007 = vmax.f32 %v975, 0.0
        %v1008 = vmax.f32 %v976, 0.0
        %v1009 = vmax.f32 %v977, 0.0
        %v1010 = vmax.f32 %v978, 0.0
        %v1011 = vmax.f32 %v979, 0.0
        %v1012 = vmax.f32 %v980, 0.0
        %v1013 = vmax.f32 %v981, 0.0
        %v1014 = vmax.f32 %v982, 0.0
        %v1015 = vmax.f32 %v983, 0.0
        %v1016 = vmax.f32 %v984, 0.0
        %v1017 = vmax.f32 %v985, 0.0
        %v1018 = vmax.f32 %v986, 0.0
        %v1019 = vmax.f32 %v987, 0.0
        %v1020 = vmax.f32 %v988, 0.0
        %v1021 = vmax.f32 %v989, 0.0
        %v1022 = vmax.f32 %v990, 0.0
        %v1023 = vmax.f32 %v991, 0.0
        %v1024 = vmax.f32 %v992, 0.0
        %v1025 = vmax.f32 %v993, 0.0
        %v1026 = vmax.f32 %v994, 0.0
        %v1027 = vmax.f32 %v995, 0.0
        %v1028 = vmax.f32 %v996, 0.0
        %v1029 = vmax.f32 %v997, 0.0
        %v1030 = vpack.c.bf16 %v1000, %v998
        %v1031 = vpack.c.bf16 %v1001, %v999
        %v1032 = vpack.c.bf16 %v1004, %v1002
        %v1033 = vpack.c.bf16 %v1005, %v1003
        %v1034 = vpack.c.bf16 %v1008, %v1006
        %v1035 = vpack.c.bf16 %v1009, %v1007
        %v1036 = vpack.c.bf16 %v1012, %v1010
        %v1037 = vpack.c.bf16 %v1013, %v1011
        %v1038 = vpack.c.bf16 %v1016, %v1014
        %v1039 = vpack.c.bf16 %v1017, %v1015
        %v1040 = vpack.c.bf16 %v1020, %v1018
        %v1041 = vpack.c.bf16 %v1021, %v1019
        %v1042 = vpack.c.bf16 %v1024, %v1022
        %v1043 = vpack.c.bf16 %v1025, %v1023
        %v1044 = vpack.c.bf16 %v1028, %v1026
        %v1045 = vpack.c.bf16 %v1029, %v1027
        %1046 = vmatpush.bf16.msra.mxu0 %v683
        %1047 = vmatpush.bf16.msra.mxu0 %v682
        %1048 = vmatpush.bf16.msra.mxu0 %v681
        %1049 = vmatpush.bf16.msra.mxu0 %v680
        %1050 = vmatpush.bf16.msra.mxu0 %v679
        %1051 = vmatpush.bf16.msra.mxu0 %v678
        %1052 = vmatpush.bf16.msra.mxu0 %v677
        %1053 = vmatpush.bf16.msra.mxu0 %v676
        %1054 = vmatmul.bf16.gmra.mxu0 %v1030
        %v1055 = vpop.f32.mrf.mxu0
        %v1056 = vadd.f32 %v610, %v1055
        %v1057 = vpop.f32.mrf.mxu0
        %v1058 = vadd.f32 %v610, %v1057
        %1059 = vmatmul.bf16.gmra.mxu0 %v1032
        %v1060 = vpop.f32.mrf.mxu0
        %v1061 = vadd.f32 %v610, %v1060
        %v1062 = vpop.f32.mrf.mxu0
        %v1063 = vadd.f32 %v610, %v1062
        %1064 = vmatmul.bf16.gmra.mxu0 %v1034
        %v1065 = vpop.f32.mrf.mxu0
        %v1066 = vadd.f32 %v610, %v1065
        %v1067 = vpop.f32.mrf.mxu0
        %v1068 = vadd.f32 %v610, %v1067
        %1069 = vmatmul.bf16.gmra.mxu0 %v1036
        %v1070 = vpop.f32.mrf.mxu0
        %v1071 = vadd.f32 %v610, %v1070
        %v1072 = vpop.f32.mrf.mxu0
        %v1073 = vadd.f32 %v610, %v1072
        %1074 = vmatmul.bf16.gmra.mxu0 %v1038
        %v1075 = vpop.f32.mrf.mxu0
        %v1076 = vadd.f32 %v610, %v1075
        %v1077 = vpop.f32.mrf.mxu0
        %v1078 = vadd.f32 %v610, %v1077
        %1079 = vmatmul.bf16.gmra.mxu0 %v1040
        %v1080 = vpop.f32.mrf.mxu0
        %v1081 = vadd.f32 %v610, %v1080
        %v1082 = vpop.f32.mrf.mxu0
        %v1083 = vadd.f32 %v610, %v1082
        %1084 = vmatmul.bf16.gmra.mxu0 %v1042
        %v1085 = vpop.f32.mrf.mxu0
        %v1086 = vadd.f32 %v610, %v1085
        %v1087 = vpop.f32.mrf.mxu0
        %v1088 = vadd.f32 %v610, %v1087
        %1089 = vmatmul.bf16.gmra.mxu0 %v1044
        %v1090 = vpop.f32.mrf.mxu0
        %v1091 = vadd.f32 %v610, %v1090
        %v1092 = vpop.f32.mrf.mxu0
        %v1093 = vadd.f32 %v610, %v1092
        %1094 = vdwg.mxu0
        %1095 = vmatpush.bf16.msra.mxu0 %v691
        %1096 = vmatpush.bf16.msra.mxu0 %v690
        %1097 = vmatpush.bf16.msra.mxu0 %v689
        %1098 = vmatpush.bf16.msra.mxu0 %v688
        %1099 = vmatpush.bf16.msra.mxu0 %v687
        %1100 = vmatpush.bf16.msra.mxu0 %v686
        %1101 = vmatpush.bf16.msra.mxu0 %v685
        %1102 = vmatpush.bf16.msra.mxu0 %v684
        %1103 = vmatmul.bf16.gmra.mxu0 %v1031
        %v1104 = vpop.f32.mrf.mxu0
        %v1105 = vadd.f32 %v1056, %v1104
        %v1106 = vpop.f32.mrf.mxu0
        %v1107 = vadd.f32 %v1058, %v1106
        %1108 = vmatmul.bf16.gmra.mxu0 %v1033
        %v1109 = vpop.f32.mrf.mxu0
        %v1110 = vadd.f32 %v1061, %v1109
        %v1111 = vpop.f32.mrf.mxu0
        %v1112 = vadd.f32 %v1063, %v1111
        %1113 = vmatmul.bf16.gmra.mxu0 %v1035
        %v1114 = vpop.f32.mrf.mxu0
        %v1115 = vadd.f32 %v1066, %v1114
        %v1116 = vpop.f32.mrf.mxu0
        %v1117 = vadd.f32 %v1068, %v1116
        %1118 = vmatmul.bf16.gmra.mxu0 %v1037
        %v1119 = vpop.f32.mrf.mxu0
        %v1120 = vadd.f32 %v1071, %v1119
        %v1121 = vpop.f32.mrf.mxu0
        %v1122 = vadd.f32 %v1073, %v1121
        %1123 = vmatmul.bf16.gmra.mxu0 %v1039
        %v1124 = vpop.f32.mrf.mxu0
        %v1125 = vadd.f32 %v1076, %v1124
        %v1126 = vpop.f32.mrf.mxu0
        %v1127 = vadd.f32 %v1078, %v1126
        %1128 = vmatmul.bf16.gmra.mxu0 %v1041
        %v1129 = vpop.f32.mrf.mxu0
        %v1130 = vadd.f32 %v1081, %v1129
        %v1131 = vpop.f32.mrf.mxu0
        %v1132 = vadd.f32 %v1083, %v1131
        %1133 = vmatmul.bf16.gmra.mxu0 %v1043
        %v1134 = vpop.f32.mrf.mxu0
        %v1135 = vadd.f32 %v1086, %v1134
        %v1136 = vpop.f32.mrf.mxu0
        %v1137 = vadd.f32 %v1088, %v1136
        %1138 = vmatmul.bf16.gmra.mxu0 %v1045
        %v1139 = vpop.f32.mrf.mxu0
        %v1140 = vadd.f32 %v1091, %v1139
        %v1141 = vpop.f32.mrf.mxu0
        %v1142 = vadd.f32 %v1093, %v1141
        %1143 = vdwg.mxu0
        %v1144 = vpack.c.bf16 %v767, %v767
        %v1145 = vpack.c.bf16 %v769, %v769
        %v1146 = vpack.c.bf16 %v772, %v772
        %v1147 = vpack.c.bf16 %v774, %v774
        %v1148 = vpack.c.bf16 %v777, %v777
        %v1149 = vpack.c.bf16 %v779, %v779
        %v1150 = vpack.c.bf16 %v782, %v782
        %v1151 = vpack.c.bf16 %v784, %v784
        %v1152 = vpack.c.bf16 %v787, %v787
        %v1153 = vpack.c.bf16 %v789, %v789
        %v1154 = vpack.c.bf16 %v792, %v792
        %v1155 = vpack.c.bf16 %v794, %v794
        %v1156 = vpack.c.bf16 %v797, %v797
        %v1157 = vpack.c.bf16 %v799, %v799
        %v1158 = vpack.c.bf16 %v802, %v802
        %v1159 = vpack.c.bf16 %v804, %v804
        %1160 = vst [vmem:[%s272] sm:$0xf] %v1144
        %1161 = vst [vmem:[%s272 + $0x8] sm:$0xf] %v1145
        %1162 = vst [vmem:[%s272 + $0x10] sm:$0xf] %v1146
        %1163 = vst [vmem:[%s272 + $0x18] sm:$0xf] %v1147
        %1164 = vst [vmem:[%s272 + $0x20] sm:$0xf] %v1148
        %1165 = vst [vmem:[%s272 + $0x28] sm:$0xf] %v1149
        %1166 = vst [vmem:[%s272 + $0x30] sm:$0xf] %v1150
        %1167 = vst [vmem:[%s272 + $0x38] sm:$0xf] %v1151
        %1168 = vst [vmem:[%s272 + $0x40] sm:$0xf] %v1152
        %1169 = vst [vmem:[%s272 + $0x48] sm:$0xf] %v1153
        %1170 = vst [vmem:[%s272 + $0x50] sm:$0xf] %v1154
        %1171 = vst [vmem:[%s272 + $0x58] sm:$0xf] %v1155
        %1172 = vst [vmem:[%s272 + $0x60] sm:$0xf] %v1156
        %1173 = vst [vmem:[%s272 + $0x68] sm:$0xf] %v1157
        %1174 = vst [vmem:[%s272 + $0x70] sm:$0xf] %v1158
        %1175 = vst [vmem:[%s272 + $0x78] sm:$0xf] %v1159
        %v1176 = vpack.c.bf16 %v1105, %v1105
        %v1177 = vpack.c.bf16 %v1107, %v1107
        %v1178 = vpack.c.bf16 %v1110, %v1110
        %v1179 = vpack.c.bf16 %v1112, %v1112
        %v1180 = vpack.c.bf16 %v1115, %v1115
        %v1181 = vpack.c.bf16 %v1117, %v1117
        %v1182 = vpack.c.bf16 %v1120, %v1120
        %v1183 = vpack.c.bf16 %v1122, %v1122
        %v1184 = vpack.c.bf16 %v1125, %v1125
        %v1185 = vpack.c.bf16 %v1127, %v1127
        %v1186 = vpack.c.bf16 %v1130, %v1130
        %v1187 = vpack.c.bf16 %v1132, %v1132
        %v1188 = vpack.c.bf16 %v1135, %v1135
        %v1189 = vpack.c.bf16 %v1137, %v1137
        %v1190 = vpack.c.bf16 %v1140, %v1140
        %v1191 = vpack.c.bf16 %v1142, %v1142
        %1192 = vst [vmem:[%s272 + $0x4] sm:$0xf] %v1176
        %1193 = vst [vmem:[%s272 + $0xc] sm:$0xf] %v1177
        %1194 = vst [vmem:[%s272 + $0x14] sm:$0xf] %v1178
        %1195 = vst [vmem:[%s272 + $0x1c] sm:$0xf] %v1179
        %1196 = vst [vmem:[%s272 + $0x24] sm:$0xf] %v1180
        %1197 = vst [vmem:[%s272 + $0x2c] sm:$0xf] %v1181
        %1198 = vst [vmem:[%s272 + $0x34] sm:$0xf] %v1182
        %1199 = vst [vmem:[%s272 + $0x3c] sm:$0xf] %v1183
        %1200 = vst [vmem:[%s272 + $0x44] sm:$0xf] %v1184
        %1201 = vst [vmem:[%s272 + $0x4c] sm:$0xf] %v1185
        %1202 = vst [vmem:[%s272 + $0x54] sm:$0xf] %v1186
        %1203 = vst [vmem:[%s272 + $0x5c] sm:$0xf] %v1187
        %1204 = vst [vmem:[%s272 + $0x64] sm:$0xf] %v1188
        %1205 = vst [vmem:[%s272 + $0x6c] sm:$0xf] %v1189
        %1206 = vst [vmem:[%s272 + $0x74] sm:$0xf] %v1190
        %1207 = vst [vmem:[%s272 + $0x7c] sm:$0xf] %v1191
        %s1208 = sand.u32 %s181, 1
        %s1209 = scalar_lea.sflag [#allocation3], %s1208
        %s1210 = sand.u32 %s181, 1
        %s1211 = smul.addr %s1210, 128
        %s1212 = scalar_lea.vmem [#allocation2], %s1211
        // Predicated region
        $region49: #{tpu_custom_call.1} parent=47 // pred_check
          %p1213 = pneg %p191
        $region50: #{tpu_custom_call.1} parent=47 // pred_check_branch
          %1215 = sbr.rel (%p1213) target = $region52
        $region51: #{tpu_custom_call.1} parent=47 // pred_region
          %s1216 = smul.u32 16, %s21
          %1218 = vsyncadd %s1209, 0
          %s1219 = smul.addr %s1216, 2
          %s1220 = smul.addr %s1219, 4
          %s1221 = scalar_lea.hbm %s7, %s1220
          %s1222 = sshll.u32 %s1212, 4
          %s1223 = int_to_ptr.vmem [resolvable:$true] %s1222
          %s1224 = sshll.u32 %s1221, 4
          %s1225 = int_to_ptr.hbm [resolvable:$true] %s1224
          %1230 = dma.vmem_to_hbm [thread:$0]  %s1223, 2048, %s1225, %s1209, 128, 128, 8
        $region52: #{tpu_custom_call.1} parent=47 // pred_fallthru
          _
      $region48: #{tpu_custom_call.1} parent=5 // pred_fallthru
        _
      %p1231 = scmp.le.s32.totalorder 2, %s16
      // Predicated region
      $region53: #{tpu_custom_call.1} parent=5 // pred_check
        %p1232 = pneg %p1231
      $region54: #{tpu_custom_call.1} parent=5 // pred_check_branch
        %1234 = sbr.rel (%p1232) target = $region56
      $region55: #{tpu_custom_call.1} parent=5 // pred_region
        %s1235 = ssub.s32 %s16, 2
        // Predicated region
        $region57: #{tpu_custom_call.1} parent=55 // pred_check
          %p1236 = pneg %p197
        $region58: #{tpu_custom_call.1} parent=55 // pred_check_branch
          %1238 = sbr.rel (%p1236) target = $region60
        $region59: #{tpu_custom_call.1} parent=55 // pred_region
          %s1239 = sand.u32 %s182, 1
          %s1240 = scalar_lea.sflag [#allocation3], %s1239
          %s1241 = sand.u32 %s182, 1
          %s1242 = smul.addr %s1241, 128
          %s1243 = scalar_lea.vmem [#allocation2], %s1242
          %1245 = dma.done %s1240, 2048
        $region60: #{tpu_custom_call.1} parent=55 // pred_fallthru
          _
      $region56: #{tpu_custom_call.1} parent=5 // pred_fallthru
        _
    $region6: #{tpu_custom_call.1} parent=1 // loop_footer
      %s20 = sadd.s32 1, %s16
    $region7: #{tpu_custom_call.1} parent=1 // loop_footer_branch
      %15 = sbr.rel target = $region3
    $region8: #{tpu_custom_call.1} parent=1 // loop_exit
      _
    %1246 = vsyncpa [#allocation3], 1
    %s1247 = scalar_lea.sflag [#allocation3], 1
    %1248 = vsyncpa %s1247, 1

</llo_original>
